<compile_context>
chip_gen: v7x
topology: tpu7x:2x2x1
jax: 0.10.0
libtpu: 0.0.40
codegen_flags: <defaults>
</compile_context>

<pallas_src>
import jax
import jax.numpy as jnp
from jax.experimental import pallas as pl
from jax.experimental.pallas import tpu as pltpu

IN_DIM = 7
IN_PAD = 8          # pad the 7 input features up to one sublane group
HIDDEN = 64


def pinn_kernel(x_ref, w1_ref, b1_ref, w2_ref, b2_ref, w3_ref, b3_ref, o_ref):
    """One batch tile, batch on lanes: x (8, T) -> tanh MLP -> o (1, T)."""
    cd = x_ref.dtype
    x = x_ref[...]                                                     # (8, T)  cd
    h1 = jnp.dot(w1_ref[...], x, preferred_element_type=jnp.float32)   # (64, T) f32 acc
    h1 = jnp.tanh((h1 + b1_ref[...]).astype(cd))                       # EUP tanh in cd
    h2 = jnp.dot(w2_ref[...], h1, preferred_element_type=jnp.float32)  # (64, T) f32 acc
    h2 = jnp.tanh((h2 + b2_ref[...]).astype(cd))
    # 64 -> 1 projection: VPU mul + XLU sublane reduce (an MXU matmul with a single
    # output row would use <=1/128 of the array and only add drain latency).
    out = jnp.sum(w3_ref[...] * h2.astype(jnp.float32), axis=0, keepdims=True)  # (1, T)
    o_ref[...] = (out + b3_ref[0, 0]).astype(o_ref.dtype)


def _default_compute_dtype():
    """bf16 activations/tanh on v6e/v7x (native bf16 EUP/VPU); f32 elsewhere (v5e)."""
    try:
        kind = jax.devices()[0].device_kind.lower()
    except Exception:
        return jnp.float32
    if "v5" in kind:
        return jnp.float32
    if "v6" in kind or "v7" in kind or "7x" in kind:
        return jnp.bfloat16
    return jnp.float32


def pinn_forward(x, params, *, compute_dtype=None, tile=4096):
    """x: (N, 7) float32. params: PyTorch-layout weights (out, in) and biases (out,)."""
    if compute_dtype is None:
        compute_dtype = _default_compute_dtype()
    n = x.shape[0]

    # Batch maps to lanes: lane tile is a multiple of 128, capped for tiny batches.
    lane_tile = min(tile, pl.cdiv(n, 128) * 128)
    n_pad = pl.cdiv(n, lane_tile) * lane_tile
    grid = (n_pad // lane_tile,)

    # x -> (8, n_pad): features on sublanes, batch on lanes (lane-dense I/O).
    x_t = jnp.zeros((IN_PAD, n_pad), compute_dtype).at[:IN_DIM, :n].set(
        x.T.astype(compute_dtype))

    # Weights stay in PyTorch (out, in) layout: h = W @ x_cols. Pad w1's in-dim to 8.
    w1 = jnp.zeros((HIDDEN, IN_PAD), compute_dtype).at[:, :IN_DIM].set(
        params["w1"].astype(compute_dtype))                       # (64, 8)
    w2 = params["w2"].astype(compute_dtype)                       # (64, 64)
    w3 = params["w3"].reshape(HIDDEN, 1).astype(jnp.float32)      # (64, 1) f32
    b1 = params["b1"].reshape(HIDDEN, 1).astype(jnp.float32)      # (64, 1) f32
    b2 = params["b2"].reshape(HIDDEN, 1).astype(jnp.float32)      # (64, 1) f32
    b3 = params["b3"].reshape(1, 1).astype(jnp.float32)           # scalar, via SMEM

    const = lambda shape: pl.BlockSpec(shape, lambda i: (0, 0))   # VMEM-resident params

    flops = 2 * n_pad * (IN_PAD * HIDDEN + HIDDEN * HIDDEN + HIDDEN)
    transcendentals = 2 * HIDDEN * n_pad
    bytes_accessed = int(x_t.nbytes + 4 * n_pad + w1.nbytes + w2.nbytes
                         + w3.nbytes + b1.nbytes + b2.nbytes + b3.nbytes)

    out = pl.pallas_call(
        pinn_kernel,
        out_shape=jax.ShapeDtypeStruct((1, n_pad), jnp.float32),
        grid=grid,
        in_specs=[
            pl.BlockSpec((IN_PAD, lane_tile), lambda i: (0, i)),   # x tile (pipelined)
            const((HIDDEN, IN_PAD)),                               # w1
            const((HIDDEN, 1)),                                    # b1
            const((HIDDEN, HIDDEN)),                               # w2
            const((HIDDEN, 1)),                                    # b2
            const((HIDDEN, 1)),                                    # w3
            pl.BlockSpec(memory_space=pltpu.MemorySpace.SMEM),     # b3 scalar
        ],
        out_specs=pl.BlockSpec((1, lane_tile), lambda i: (0, i)),  # lane-dense store
        compiler_params=pltpu.CompilerParams(
            dimension_semantics=("parallel",)),
        cost_estimate=pl.CostEstimate(
            flops=flops, transcendentals=transcendentals,
            bytes_accessed=bytes_accessed),
    )(x_t, w1, b1, w2, b2, w3, b3)

    return out[0, :n].reshape(n, 1)


def init_params(key):
    """Deterministic synthetic init matching nn.Linear shapes (weight: (out, in))."""
    ks = jax.random.split(key, 6)

    def lin(kw, kb, fan_in, fan_out):
        bound = 1.0 / jnp.sqrt(fan_in)
        w = jax.random.uniform(kw, (fan_out, fan_in), jnp.float32, -bound, bound)
        b = jax.random.uniform(kb, (fan_out,), jnp.float32, -bound, bound)
        return w, b

    w1, b1 = lin(ks[0], ks[1], 7, 64)
    w2, b2 = lin(ks[2], ks[3], 64, 64)
    w3, b3 = lin(ks[4], ks[5], 64, 1)
    return {"w1": w1, "b1": b1, "w2": w2, "b2": b2, "w3": w3, "b3": b3}


def pinn_reference(x, params):
    h = jnp.tanh(x @ params["w1"].T + params["b1"])
    h = jnp.tanh(h @ params["w2"].T + params["b2"])
    return h @ params["w3"].T + params["b3"]


if __name__ == "__main__":
    key = jax.random.PRNGKey(0)
    k_params, k_x = jax.random.split(key)

    params = init_params(k_params)
    x = jax.random.uniform(k_x, (8, 7), jnp.float32)   # small batch of 7-dim inputs

    ref = pinn_reference(x, params)

    # Structural check in full f32 (exact vs. reference, chip-independent).
    out_f32 = pinn_forward(x, params, compute_dtype=jnp.float32)
    jax.block_until_ready(out_f32)
    assert out_f32.shape == (8, 1)
    assert jnp.allclose(out_f32, ref, atol=1e-5, rtol=1e-5)

    # Default path: bf16 activations/tanh on v6e/v7x, f32 on v5e/other.
    out = pinn_forward(x, params)
    jax.block_until_ready(out)
    assert out.shape == (8, 1)
    tol = 5e-2 if _default_compute_dtype() == jnp.bfloat16 else 1e-5
    assert jnp.allclose(out, ref, atol=tol, rtol=tol)

    print("KERNEL_OK")
</pallas_src>

<mosaic_0001>
module attributes {stable_mosaic.version = 11 : i64} {
  func.func @pinn_kernel(%arg0: i32, %arg1: memref<8x128xf32, #tpu.memory_space<vmem>>, %arg2: memref<64x8xf32, #tpu.memory_space<vmem>>, %arg3: memref<64x1xf32, #tpu.memory_space<vmem>>, %arg4: memref<64x64xf32, #tpu.memory_space<vmem>>, %arg5: memref<64x1xf32, #tpu.memory_space<vmem>>, %arg6: memref<64x1xf32, #tpu.memory_space<vmem>>, %arg7: memref<1x1xf32, #tpu.memory_space<smem>>, %arg8: memref<1x128xf32, #tpu.memory_space<vmem>>) attributes {dimension_semantics = [#tpu.dimension_semantics<parallel>], iteration_bounds = array<i64: 1>, scalar_prefetch = 0 : i64, scratch_operands = 0 : i64, tpu.core_type = #tpu.core_type<tc>, window_params = [{transform_indices = @transform_0, window_bounds = array<i64: 8, 128>}, {pipeline_mode = #tpu.pipeline_mode<synchronous>, transform_indices = @transform_1, window_bounds = array<i64: 64, 8>}, {pipeline_mode = #tpu.pipeline_mode<synchronous>, transform_indices = @transform_2, window_bounds = array<i64: 64, 1>}, {pipeline_mode = #tpu.pipeline_mode<synchronous>, transform_indices = @transform_3, window_bounds = array<i64: 64, 64>}, {pipeline_mode = #tpu.pipeline_mode<synchronous>, transform_indices = @transform_4, window_bounds = array<i64: 64, 1>}, {pipeline_mode = #tpu.pipeline_mode<synchronous>, transform_indices = @transform_5, window_bounds = array<i64: 64, 1>}, {transform_indices = @transform_6, window_bounds = array<i64: 1, 1>}, {transform_indices = @transform_7, window_bounds = array<i64: 1, 128>}]} {
    %c0 = arith.constant 0 : index
    %c0_0 = arith.constant 0 : index
    %0 = vector.load %arg1[%c0, %c0_0] : memref<8x128xf32, #tpu.memory_space<vmem>>, vector<8x128xf32>
    %c0_1 = arith.constant 0 : index
    %c0_2 = arith.constant 0 : index
    %1 = vector.load %arg2[%c0_1, %c0_2] : memref<64x8xf32, #tpu.memory_space<vmem>>, vector<64x8xf32>
    %cst = arith.constant dense<0.000000e+00> : vector<64x128xf32>
    %2 = tpu.matmul %1, %0, %cst {dimension_numbers = #tpu.dot_dimension_numbers<[1], [0], [0], [1], [0, 0, 1, 1], [], []>} : vector<64x8xf32>, vector<8x128xf32>, vector<64x128xf32> -> vector<64x128xf32>
    %c0_3 = arith.constant 0 : index
    %c0_4 = arith.constant 0 : index
    %3 = vector.load %arg3[%c0_3, %c0_4] : memref<64x1xf32, #tpu.memory_space<vmem>>, vector<64x1xf32>
    %4 = vector.broadcast %3 : vector<64x1xf32> to vector<64x128xf32>
    %5 = arith.addf %2, %4 : vector<64x128xf32>
    %6 = math.tanh %5 : vector<64x128xf32>
    %c0_5 = arith.constant 0 : index
    %c0_6 = arith.constant 0 : index
    %7 = vector.load %arg4[%c0_5, %c0_6] : memref<64x64xf32, #tpu.memory_space<vmem>>, vector<64x64xf32>
    %cst_7 = arith.constant dense<0.000000e+00> : vector<64x128xf32>
    %8 = tpu.matmul %7, %6, %cst_7 {dimension_numbers = #tpu.dot_dimension_numbers<[1], [0], [0], [1], [0, 0, 1, 1], [], []>} : vector<64x64xf32>, vector<64x128xf32>, vector<64x128xf32> -> vector<64x128xf32>
    %c0_8 = arith.constant 0 : index
    %c0_9 = arith.constant 0 : index
    %9 = vector.load %arg5[%c0_8, %c0_9] : memref<64x1xf32, #tpu.memory_space<vmem>>, vector<64x1xf32>
    %10 = vector.broadcast %9 : vector<64x1xf32> to vector<64x128xf32>
    %11 = arith.addf %8, %10 : vector<64x128xf32>
    %12 = math.tanh %11 : vector<64x128xf32>
    %c0_10 = arith.constant 0 : index
    %c0_11 = arith.constant 0 : index
    %13 = vector.load %arg6[%c0_10, %c0_11] : memref<64x1xf32, #tpu.memory_space<vmem>>, vector<64x1xf32>
    %14 = vector.broadcast %13 : vector<64x1xf32> to vector<64x128xf32>
    %15 = arith.mulf %14, %12 : vector<64x128xf32>
    %cst_12 = arith.constant dense<0.000000e+00> : vector<128xf32>
    %16 = vector.multi_reduction <add>, %15, %cst_12 [0] : vector<64x128xf32> to vector<128xf32>
    %17 = vector.shape_cast %16 : vector<128xf32> to vector<1x128xf32>
    %c0_13 = arith.constant 0 : index
    %c0_14 = arith.constant 0 : index
    %18 = memref.load %arg7[%c0_13, %c0_14] : memref<1x1xf32, #tpu.memory_space<smem>>
    %19 = vector.broadcast %18 : f32 to vector<1x128xf32>
    %20 = arith.addf %17, %19 : vector<1x128xf32>
    %c0_15 = arith.constant 0 : index
    %c0_16 = arith.constant 0 : index
    %21 = vector.load %arg8[%c0_15, %c0_16] : memref<1x128xf32, #tpu.memory_space<vmem>>, vector<1x128xf32>
    tpu.vector_store %arg8[%c0_15, %c0_16], %20 {strides = array<i32>} : memref<1x128xf32, #tpu.memory_space<vmem>>, vector<1x128xf32>,
    return
  }
  func.func @transform_0(%arg0: i32) -> (i32, i32) {
    %c0_i32 = arith.constant 0 : i32
    %c0_i32_0 = arith.constant 0 : i32
    return %c0_i32, %arg0 : i32, i32
  }
  func.func @transform_1(%arg0: i32) -> (i32, i32) {
    %c0_i32 = arith.constant 0 : i32
    %c0_i32_0 = arith.constant 0 : i32
    %c0_i32_1 = arith.constant 0 : i32
    return %c0_i32, %c0_i32_0 : i32, i32
  }
  func.func @transform_2(%arg0: i32) -> (i32, i32) {
    %c0_i32 = arith.constant 0 : i32
    %c0_i32_0 = arith.constant 0 : i32
    %c0_i32_1 = arith.constant 0 : i32
    return %c0_i32, %c0_i32_0 : i32, i32
  }
  func.func @transform_3(%arg0: i32) -> (i32, i32) {
    %c0_i32 = arith.constant 0 : i32
    %c0_i32_0 = arith.constant 0 : i32
    %c0_i32_1 = arith.constant 0 : i32
    return %c0_i32, %c0_i32_0 : i32, i32
  }
  func.func @transform_4(%arg0: i32) -> (i32, i32) {
    %c0_i32 = arith.constant 0 : i32
    %c0_i32_0 = arith.constant 0 : i32
    %c0_i32_1 = arith.constant 0 : i32
    return %c0_i32, %c0_i32_0 : i32, i32
  }
  func.func @transform_5(%arg0: i32) -> (i32, i32) {
    %c0_i32 = arith.constant 0 : i32
    %c0_i32_0 = arith.constant 0 : i32
    %c0_i32_1 = arith.constant 0 : i32
    return %c0_i32, %c0_i32_0 : i32, i32
  }
  func.func @transform_6(%arg0: i32) -> (i32, i32) {
    %c0_i32 = arith.constant 0 : i32
    %c0_i32_0 = arith.constant 0 : i32
    %c0_i32_1 = arith.constant 0 : i32
    return %c0_i32, %c0_i32_0 : i32, i32
  }
  func.func @transform_7(%arg0: i32) -> (i32, i32) {
    %c0_i32 = arith.constant 0 : i32
    %c0_i32_0 = arith.constant 0 : i32
    return %c0_i32, %arg0 : i32, i32
  }
}

</mosaic_0001>

<llo_original>
// kernel: tpu_custom_call.1
$region0: #{tpu_custom_call.1}
  #allocation0 [shape = 'u32[]', space=smem, size = 0x4, offset = 0x4, fixed_abs, tag = 'smem constant byte address 0x4 - core index']
  #allocation1 [shape = 'u32[144,128]{1,0:T(1,128)}', space=vmem, size = 0x12000, scoped, tag = 'internal scratch']
  #allocation2 [shape = 'f32[1,1]{1,0:T(1,128)S(6)}', space=smem, size = 0x200, scoped, tag = 'scoped memory for tpu_custom_call.1']
  %s0 = inlined_call_operand.vmem [shape: f32[8,128], index: 0, kind: input, shape index: {}]
  %s1 = inlined_call_operand.vmem [shape: f32[64,8], index: 1, kind: input, shape index: {}]
  %s2 = inlined_call_operand.vmem [shape: f32[64,1], index: 2, kind: input, shape index: {}]
  %s3 = inlined_call_operand.vmem [shape: f32[64,64], index: 3, kind: input, shape index: {}]
  %s4 = inlined_call_operand.vmem [shape: f32[64,1], index: 4, kind: input, shape index: {}]
  %s5 = inlined_call_operand.vmem [shape: f32[64,1], index: 5, kind: input, shape index: {}]
  %s6 = inlined_call_operand.<no memory space> [shape: f32[1,1], index: 6, kind: input, shape index: {}]
  %s7 = inlined_call_operand.hbm [shape: f32[1,128], index: 7, kind: output, shape index: {}]
  %s8 = sld [smem:[#allocation0]]
  $region38: #{tpu_custom_call.1} parent=0
    _
  %s10 = ssub.s32 1, %s8
  %s11 = scalar_select 0, %s10, %s8
  %12 = sst [smem:[#allocation2]] %s6
  $region1: #{tpu_custom_call.1} parent=0
    #allocation3 [shape = 'u8[512]{0}', space=vmem, size = 0x400, scoped, tag = 'output window, operand 0, single buffered']
    #allocation4 [shape = 's32[1]{0}', space=sflag, size = 0x4, scoped, tag = 'scoped memory for tpu_custom_call.1']
    %13 = vsyncpa [#allocation4], 0
    // Predicated region
    $region2: #{tpu_custom_call.1} parent=1 // pred_check
      _
    $region3: #{tpu_custom_call.1} parent=1 // pred_check_branch
      %15 = sbr.rel (0) target = $region5
    $region4: #{tpu_custom_call.1} parent=1 // pred_region
      _
    $region5: #{tpu_custom_call.1} parent=1 // pred_fallthru
      _
    // Predicated region
    $region6: #{tpu_custom_call.1} parent=1 // pred_check
      _
    $region7: #{tpu_custom_call.1} parent=1 // pred_check_branch
      %17 = sbr.rel (0) target = $region9
    $region8: #{tpu_custom_call.1} parent=1 // pred_region
      _
    $region9: #{tpu_custom_call.1} parent=1 // pred_fallthru
      _
    // Predicated region
    $region10: #{tpu_custom_call.1} parent=1 // pred_check
      _
    $region11: #{tpu_custom_call.1} parent=1 // pred_check_branch
      %19 = sbr.rel (0) target = $region13
    $region12: #{tpu_custom_call.1} parent=1 // pred_region
      _
    $region13: #{tpu_custom_call.1} parent=1 // pred_fallthru
      _
    // Predicated region
    $region14: #{tpu_custom_call.1} parent=1 // pred_check
      _
    $region15: #{tpu_custom_call.1} parent=1 // pred_check_branch
      %21 = sbr.rel (0) target = $region17
    $region16: #{tpu_custom_call.1} parent=1 // pred_region
      _
    $region17: #{tpu_custom_call.1} parent=1 // pred_fallthru
      _
    // Predicated region
    $region18: #{tpu_custom_call.1} parent=1 // pred_check
      _
    $region19: #{tpu_custom_call.1} parent=1 // pred_check_branch
      %23 = sbr.rel (0) target = $region21
    $region20: #{tpu_custom_call.1} parent=1 // pred_region
      _
    $region21: #{tpu_custom_call.1} parent=1 // pred_fallthru
      _
    // Predicated region
    $region22: #{tpu_custom_call.1} parent=1 // pred_check
      _
    $region23: #{tpu_custom_call.1} parent=1 // pred_check_branch
      %25 = sbr.rel (0) target = $region25
    $region24: #{tpu_custom_call.1} parent=1 // pred_region
      _
    $region25: #{tpu_custom_call.1} parent=1 // pred_fallthru
      _
    // Predicated region
    $region26: #{tpu_custom_call.1} parent=1 // pred_check
      _
    $region27: #{tpu_custom_call.1} parent=1 // pred_check_branch
      %27 = sbr.rel (0) target = $region29
    $region28: #{tpu_custom_call.1} parent=1 // pred_region
      _
    $region29: #{tpu_custom_call.1} parent=1 // pred_fallthru
      _
    %v28 = vld [vmem:[%s0] sm:$0xff]
    %v29 = vld [vmem:[%s1] sm:$0xff]
    %v30 = vld [vmem:[%s1 + $0x8] sm:$0xff]
    %v31 = vld [vmem:[%s1 + $0x10] sm:$0xff]
    %v32 = vld [vmem:[%s1 + $0x18] sm:$0xff]
    %v33 = vld [vmem:[%s1 + $0x20] sm:$0xff]
    %v34 = vld [vmem:[%s1 + $0x28] sm:$0xff]
    %v35 = vld [vmem:[%s1 + $0x30] sm:$0xff]
    %v36 = vld [vmem:[%s1 + $0x38] sm:$0xff]
    %v37 = vld [vmem:[%s2] sm:$0xff]
    %v38 = vld [vmem:[%s2 + $0x8] sm:$0xff]
    %v39 = vld [vmem:[%s2 + $0x10] sm:$0xff]
    %v40 = vld [vmem:[%s2 + $0x18] sm:$0xff]
    %v41 = vld [vmem:[%s2 + $0x20] sm:$0xff]
    %v42 = vld [vmem:[%s2 + $0x28] sm:$0xff]
    %v43 = vld [vmem:[%s2 + $0x30] sm:$0xff]
    %v44 = vld [vmem:[%s2 + $0x38] sm:$0xff]
    %46 = vset.pattern.permute.xlu0 0
    %47 = vperm.xlu0 %46, %v37
    %v48 = vpop.permute.xlu0 %47
    %51 = vset.pattern.permute.xlu0 0
    %52 = vperm.xlu0 %51, %v38
    %v53 = vpop.permute.xlu0 %52
    %56 = vset.pattern.permute.xlu0 0
    %57 = vperm.xlu0 %56, %v39
    %v58 = vpop.permute.xlu0 %57
    %61 = vset.pattern.permute.xlu0 0
    %62 = vperm.xlu0 %61, %v40
    %v63 = vpop.permute.xlu0 %62
    %66 = vset.pattern.permute.xlu0 0
    %67 = vperm.xlu0 %66, %v41
    %v68 = vpop.permute.xlu0 %67
    %71 = vset.pattern.permute.xlu0 0
    %72 = vperm.xlu0 %71, %v42
    %v73 = vpop.permute.xlu0 %72
    %76 = vset.pattern.permute.xlu0 0
    %77 = vperm.xlu0 %76, %v43
    %v78 = vpop.permute.xlu0 %77
    %81 = vset.pattern.permute.xlu0 0
    %82 = vperm.xlu0 %81, %v44
    %v83 = vpop.permute.xlu0 %82
    %vm85 = vcmask 64512
    %v87 = vsel %vm85, %v29, 0
    %v90 = vsel %vm85, %v30, 0
    %v93 = vsel %vm85, %v31, 0
    %v96 = vsel %vm85, %v32, 0
    %v99 = vsel %vm85, %v33, 0
    %v102 = vsel %vm85, %v34, 0
    %v105 = vsel %vm85, %v35, 0
    %v108 = vsel %vm85, %v36, 0
    %110 = vmatprep.subr.mxu0 0.0
    %111 = vmatpush1.msra.mxu0 %v28
    %112 = vmatprep.subr.mxu0 0.0
    %113 = vmatpush1.msra.mxu0 0.0
    %114 = vmatprep.subr.mxu0 0.0
    %115 = vmatpush1.msra.mxu0 0.0
    %116 = vmatprep.subr.mxu0 0.0
    %117 = vmatpush1.msra.mxu0 0.0
    %118 = vmatprep.subr.mxu0 0.0
    %119 = vmatpush1.msra.mxu0 0.0
    %120 = vmatprep.subr.mxu0 0.0
    %121 = vmatpush1.msra.mxu0 0.0
    %122 = vmatprep.subr.mxu0 0.0
    %123 = vmatpush1.msra.mxu0 0.0
    %124 = vmatprep.subr.mxu0 0.0
    %125 = vmatpush1.msra.mxu0 0.0
    %126 = vmatprep.subr.mxu0 0.0
    %127 = vmatpush1.msra.mxu0 0.0
    %128 = vmatprep.subr.mxu0 0.0
    %129 = vmatpush1.msra.mxu0 0.0
    %130 = vmatprep.subr.mxu0 0.0
    %131 = vmatpush1.msra.mxu0 0.0
    %132 = vmatprep.subr.mxu0 0.0
    %133 = vmatpush1.msra.mxu0 0.0
    %134 = vmatprep.subr.mxu0 0.0
    %135 = vmatpush1.msra.mxu0 0.0
    %136 = vmatprep.subr.mxu0 0.0
    %137 = vmatpush1.msra.mxu0 0.0
    %138 = vmatprep.subr.mxu0 0.0
    %139 = vmatpush1.msra.mxu0 0.0
    %140 = vmatprep.subr.mxu0 0.0
    %141 = vmatpush1.msra.mxu0 0.0
    %142 = vmatprep.subr.mxu0 0.0
    %143 = vmatpush1.msra.mxu0 0.0
    %144 = vmatprep.subr.mxu0 0.0
    %145 = vmatpush1.msra.mxu0 0.0
    %146 = vmatprep.subr.mxu0 0.0
    %147 = vmatpush1.msra.mxu0 0.0
    %148 = vmatprep.subr.mxu0 0.0
    %149 = vmatpush1.msra.mxu0 0.0
    %150 = vmatprep.subr.mxu0 0.0
    %151 = vmatpush1.msra.mxu0 0.0
    %152 = vmatprep.subr.mxu0 0.0
    %153 = vmatpush1.msra.mxu0 0.0
    %154 = vmatprep.subr.mxu0 0.0
    %155 = vmatpush1.msra.mxu0 0.0
    %156 = vmatprep.subr.mxu0 0.0
    %157 = vmatpush1.msra.mxu0 0.0
    %158 = vmatprep.subr.mxu0 0.0
    %159 = vmatpush1.msra.mxu0 0.0
    %160 = vmatprep.subr.mxu0 0.0
    %161 = vmatpush1.msra.mxu0 0.0
    %162 = vmatprep.subr.mxu0 0.0
    %163 = vmatpush1.msra.mxu0 0.0
    %164 = vmatprep.subr.mxu0 0.0
    %165 = vmatpush1.msra.mxu0 0.0
    %166 = vmatprep.subr.mxu0 0.0
    %167 = vmatpush1.msra.mxu0 0.0
    %168 = vmatprep.subr.mxu0 0.0
    %169 = vmatpush1.msra.mxu0 0.0
    %170 = vmatprep.subr.mxu0 0.0
    %171 = vmatpush1.msra.mxu0 0.0
    %172 = vmatprep.subr.mxu0 0.0
    %173 = vmatpush1.msra.mxu0 0.0
    %174 = vmatprep.mubr.f32.mxu0 0.0
    %175 = vmatmul.mubr.f32.gmra.mrb[0].mxu0 %v87
    %v176 = vpop.f32.mrb[0].mxu0
    %v177 = vadd.f32 %v48, %v176
    %v178 = vpop.f32.mrb[0].mxu0
    %179 = vmatprep.mubr.f32.mxu0 0.0
    %180 = vmatmul.mubr.f32.gmra.mrb[0].mxu0 %v90
    %v181 = vpop.f32.mrb[0].mxu0
    %v182 = vadd.f32 %v53, %v181
    %v183 = vpop.f32.mrb[0].mxu0
    %184 = vmatprep.mubr.f32.mxu0 0.0
    %185 = vmatmul.mubr.f32.gmra.mrb[0].mxu0 %v93
    %v186 = vpop.f32.mrb[0].mxu0
    %v187 = vadd.f32 %v58, %v186
    %v188 = vpop.f32.mrb[0].mxu0
    %189 = vmatprep.mubr.f32.mxu0 0.0
    %190 = vmatmul.mubr.f32.gmra.mrb[0].mxu0 %v96
    %v191 = vpop.f32.mrb[0].mxu0
    %v192 = vadd.f32 %v63, %v191
    %v193 = vpop.f32.mrb[0].mxu0
    %194 = vmatprep.mubr.f32.mxu0 0.0
    %195 = vmatmul.mubr.f32.gmra.mrb[0].mxu0 %v99
    %v196 = vpop.f32.mrb[0].mxu0
    %v197 = vadd.f32 %v68, %v196
    %v198 = vpop.f32.mrb[0].mxu0
    %199 = vmatprep.mubr.f32.mxu0 0.0
    %200 = vmatmul.mubr.f32.gmra.mrb[0].mxu0 %v102
    %v201 = vpop.f32.mrb[0].mxu0
    %v202 = vadd.f32 %v73, %v201
    %v203 = vpop.f32.mrb[0].mxu0
    %204 = vmatprep.mubr.f32.mxu0 0.0
    %205 = vmatmul.mubr.f32.gmra.mrb[0].mxu0 %v105
    %v206 = vpop.f32.mrb[0].mxu0
    %v207 = vadd.f32 %v78, %v206
    %v208 = vpop.f32.mrb[0].mxu0
    %209 = vmatprep.mubr.f32.mxu0 0.0
    %210 = vmatmul.mubr.f32.gmra.mrb[0].mxu0 %v108
    %v211 = vpop.f32.mrb[0].mxu0
    %v212 = vadd.f32 %v83, %v211
    %v213 = vpop.f32.mrb[0].mxu0
    %214 = vdwg.mxu0
    %v215 = vtanh.pop %v177
    %v216 = vtanh.pop %v182
    %v217 = vtanh.pop %v187
    %v218 = vtanh.pop %v192
    %v219 = vtanh.pop %v197
    %v220 = vtanh.pop %v202
    %v221 = vtanh.pop %v207
    %v222 = vtanh.pop %v212
    %v223 = vld [vmem:[%s3] sm:$0xff]
    %v224 = vld [vmem:[%s3 + $0x8] sm:$0xff]
    %v225 = vld [vmem:[%s3 + $0x10] sm:$0xff]
    %v226 = vld [vmem:[%s3 + $0x18] sm:$0xff]
    %v227 = vld [vmem:[%s3 + $0x20] sm:$0xff]
    %v228 = vld [vmem:[%s3 + $0x28] sm:$0xff]
    %v229 = vld [vmem:[%s3 + $0x30] sm:$0xff]
    %v230 = vld [vmem:[%s3 + $0x38] sm:$0xff]
    %v231 = vld [vmem:[%s4] sm:$0xff]
    %v232 = vld [vmem:[%s4 + $0x8] sm:$0xff]
    %v233 = vld [vmem:[%s4 + $0x10] sm:$0xff]
    %v234 = vld [vmem:[%s4 + $0x18] sm:$0xff]
    %v235 = vld [vmem:[%s4 + $0x20] sm:$0xff]
    %v236 = vld [vmem:[%s4 + $0x28] sm:$0xff]
    %v237 = vld [vmem:[%s4 + $0x30] sm:$0xff]
    %v238 = vld [vmem:[%s4 + $0x38] sm:$0xff]
    %240 = vset.pattern.permute.xlu0 0
    %241 = vperm.xlu0 %240, %v231
    %v242 = vpop.permute.xlu0 %241
    %245 = vset.pattern.permute.xlu0 0
    %246 = vperm.xlu0 %245, %v232
    %v247 = vpop.permute.xlu0 %246
    %250 = vset.pattern.permute.xlu0 0
    %251 = vperm.xlu0 %250, %v233
    %v252 = vpop.permute.xlu0 %251
    %255 = vset.pattern.permute.xlu0 0
    %256 = vperm.xlu0 %255, %v234
    %v257 = vpop.permute.xlu0 %256
    %260 = vset.pattern.permute.xlu0 0
    %261 = vperm.xlu0 %260, %v235
    %v262 = vpop.permute.xlu0 %261
    %265 = vset.pattern.permute.xlu0 0
    %266 = vperm.xlu0 %265, %v236
    %v267 = vpop.permute.xlu0 %266
    %270 = vset.pattern.permute.xlu0 0
    %271 = vperm.xlu0 %270, %v237
    %v272 = vpop.permute.xlu0 %271
    %275 = vset.pattern.permute.xlu0 0
    %276 = vperm.xlu0 %275, %v238
    %v277 = vpop.permute.xlu0 %276
    %vm279 = vcmask 523264
    %v281 = vsel %vm279, %v223, 0
    %v284 = vsel %vm279, %v224, 0
    %v287 = vsel %vm279, %v225, 0
    %v290 = vsel %vm279, %v226, 0
    %v293 = vsel %vm279, %v227, 0
    %v296 = vsel %vm279, %v228, 0
    %v299 = vsel %vm279, %v229, 0
    %v302 = vsel %vm279, %v230, 0
    %304 = vmatprep.subr.mxu0 0.0
    %305 = vmatpush1.msra.mxu0 %v215
    %306 = vmatprep.subr.mxu0 0.0
    %307 = vmatpush1.msra.mxu0 %v216
    %308 = vmatprep.subr.mxu0 0.0
    %309 = vmatpush1.msra.mxu0 %v217
    %310 = vmatprep.subr.mxu0 0.0
    %311 = vmatpush1.msra.mxu0 %v218
    %312 = vmatprep.subr.mxu0 0.0
    %313 = vmatpush1.msra.mxu0 %v219
    %314 = vmatprep.subr.mxu0 0.0
    %315 = vmatpush1.msra.mxu0 %v220
    %316 = vmatprep.subr.mxu0 0.0
    %317 = vmatpush1.msra.mxu0 %v221
    %318 = vmatprep.subr.mxu0 0.0
    %319 = vmatpush1.msra.mxu0 %v222
    %320 = vmatprep.subr.mxu0 0.0
    %321 = vmatpush1.msra.mxu0 0.0
    %322 = vmatprep.subr.mxu0 0.0
    %323 = vmatpush1.msra.mxu0 0.0
    %324 = vmatprep.subr.mxu0 0.0
    %325 = vmatpush1.msra.mxu0 0.0
    %326 = vmatprep.subr.mxu0 0.0
    %327 = vmatpush1.msra.mxu0 0.0
    %328 = vmatprep.subr.mxu0 0.0
    %329 = vmatpush1.msra.mxu0 0.0
    %330 = vmatprep.subr.mxu0 0.0
    %331 = vmatpush1.msra.mxu0 0.0
    %332 = vmatprep.subr.mxu0 0.0
    %333 = vmatpush1.msra.mxu0 0.0
    %334 = vmatprep.subr.mxu0 0.0
    %335 = vmatpush1.msra.mxu0 0.0
    %336 = vmatprep.subr.mxu0 0.0
    %337 = vmatpush1.msra.mxu0 0.0
    %338 = vmatprep.subr.mxu0 0.0
    %339 = vmatpush1.msra.mxu0 0.0
    %340 = vmatprep.subr.mxu0 0.0
    %341 = vmatpush1.msra.mxu0 0.0
    %342 = vmatprep.subr.mxu0 0.0
    %343 = vmatpush1.msra.mxu0 0.0
    %344 = vmatprep.subr.mxu0 0.0
    %345 = vmatpush1.msra.mxu0 0.0
    %346 = vmatprep.subr.mxu0 0.0
    %347 = vmatpush1.msra.mxu0 0.0
    %348 = vmatprep.subr.mxu0 0.0
    %349 = vmatpush1.msra.mxu0 0.0
    %350 = vmatprep.subr.mxu0 0.0
    %351 = vmatpush1.msra.mxu0 0.0
    %352 = vmatprep.subr.mxu0 0.0
    %353 = vmatpush1.msra.mxu0 0.0
    %354 = vmatprep.subr.mxu0 0.0
    %355 = vmatpush1.msra.mxu0 0.0
    %356 = vmatprep.subr.mxu0 0.0
    %357 = vmatpush1.msra.mxu0 0.0
    %358 = vmatprep.subr.mxu0 0.0
    %359 = vmatpush1.msra.mxu0 0.0
    %360 = vmatprep.subr.mxu0 0.0
    %361 = vmatpush1.msra.mxu0 0.0
    %362 = vmatprep.subr.mxu0 0.0
    %363 = vmatpush1.msra.mxu0 0.0
    %364 = vmatprep.subr.mxu0 0.0
    %365 = vmatpush1.msra.mxu0 0.0
    %366 = vmatprep.subr.mxu0 0.0
    %367 = vmatpush1.msra.mxu0 0.0
    %368 = vmatprep.mubr.f32.mxu0 0.0
    %369 = vmatmul.mubr.f32.gmra.mrb[0].mxu0 %v281
    %v370 = vpop.f32.mrb[0].mxu0
    %v371 = vadd.f32 %v242, %v370
    %v372 = vpop.f32.mrb[0].mxu0
    %373 = vmatprep.mubr.f32.mxu0 0.0
    %374 = vmatmul.mubr.f32.gmra.mrb[0].mxu0 %v284
    %v375 = vpop.f32.mrb[0].mxu0
    %v376 = vadd.f32 %v247, %v375
    %v377 = vpop.f32.mrb[0].mxu0
    %378 = vmatprep.mubr.f32.mxu0 0.0
    %379 = vmatmul.mubr.f32.gmra.mrb[0].mxu0 %v287
    %v380 = vpop.f32.mrb[0].mxu0
    %v381 = vadd.f32 %v252, %v380
    %v382 = vpop.f32.mrb[0].mxu0
    %383 = vmatprep.mubr.f32.mxu0 0.0
    %384 = vmatmul.mubr.f32.gmra.mrb[0].mxu0 %v290
    %v385 = vpop.f32.mrb[0].mxu0
    %v386 = vadd.f32 %v257, %v385
    %v387 = vpop.f32.mrb[0].mxu0
    %388 = vmatprep.mubr.f32.mxu0 0.0
    %389 = vmatmul.mubr.f32.gmra.mrb[0].mxu0 %v293
    %v390 = vpop.f32.mrb[0].mxu0
    %v391 = vadd.f32 %v262, %v390
    %v392 = vpop.f32.mrb[0].mxu0
    %393 = vmatprep.mubr.f32.mxu0 0.0
    %394 = vmatmul.mubr.f32.gmra.mrb[0].mxu0 %v296
    %v395 = vpop.f32.mrb[0].mxu0
    %v396 = vadd.f32 %v267, %v395
    %v397 = vpop.f32.mrb[0].mxu0
    %398 = vmatprep.mubr.f32.mxu0 0.0
    %399 = vmatmul.mubr.f32.gmra.mrb[0].mxu0 %v299
    %v400 = vpop.f32.mrb[0].mxu0
    %v401 = vadd.f32 %v272, %v400
    %v402 = vpop.f32.mrb[0].mxu0
    %403 = vmatprep.mubr.f32.mxu0 0.0
    %404 = vmatmul.mubr.f32.gmra.mrb[0].mxu0 %v302
    %v405 = vpop.f32.mrb[0].mxu0
    %v406 = vadd.f32 %v277, %v405
    %v407 = vpop.f32.mrb[0].mxu0
    %408 = vdwg.mxu0
    %v409 = vtanh.pop %v371
    %v410 = vtanh.pop %v376
    %v411 = vtanh.pop %v381
    %v412 = vtanh.pop %v386
    %v413 = vtanh.pop %v391
    %v414 = vtanh.pop %v396
    %v415 = vtanh.pop %v401
    %v416 = vtanh.pop %v406
    %v417 = vld [vmem:[%s5] sm:$0xff]
    %v418 = vld [vmem:[%s5 + $0x8] sm:$0xff]
    %v419 = vld [vmem:[%s5 + $0x10] sm:$0xff]
    %v420 = vld [vmem:[%s5 + $0x18] sm:$0xff]
    %v421 = vld [vmem:[%s5 + $0x20] sm:$0xff]
    %v422 = vld [vmem:[%s5 + $0x28] sm:$0xff]
    %v423 = vld [vmem:[%s5 + $0x30] sm:$0xff]
    %v424 = vld [vmem:[%s5 + $0x38] sm:$0xff]
    %426 = vset.pattern.permute.xlu0 0
    %427 = vperm.xlu0 %426, %v417
    %v428 = vpop.permute.xlu0 %427
    %431 = vset.pattern.permute.xlu0 0
    %432 = vperm.xlu0 %431, %v418
    %v433 = vpop.permute.xlu0 %432
    %436 = vset.pattern.permute.xlu0 0
    %437 = vperm.xlu0 %436, %v419
    %v438 = vpop.permute.xlu0 %437
    %441 = vset.pattern.permute.xlu0 0
    %442 = vperm.xlu0 %441, %v420
    %v443 = vpop.permute.xlu0 %442
    %446 = vset.pattern.permute.xlu0 0
    %447 = vperm.xlu0 %446, %v421
    %v448 = vpop.permute.xlu0 %447
    %451 = vset.pattern.permute.xlu0 0
    %452 = vperm.xlu0 %451, %v422
    %v453 = vpop.permute.xlu0 %452
    %456 = vset.pattern.permute.xlu0 0
    %457 = vperm.xlu0 %456, %v423
    %v458 = vpop.permute.xlu0 %457
    %461 = vset.pattern.permute.xlu0 0
    %462 = vperm.xlu0 %461, %v424
    %v463 = vpop.permute.xlu0 %462
    %v465 = vmul.f32 %v428, %v409
    %v466 = vmul.f32 %v433, %v410
    %v467 = vmul.f32 %v438, %v411
    %v468 = vmul.f32 %v443, %v412
    %v469 = vmul.f32 %v448, %v413
    %v470 = vmul.f32 %v453, %v414
    %v471 = vmul.f32 %v458, %v415
    %v472 = vmul.f32 %v463, %v416
    %v473 = vadd.f32 %v465, %v466
    %v474 = vadd.f32 %v473, %v467
    %v475 = vadd.f32 %v474, %v468
    %v476 = vadd.f32 %v475, %v469
    %v477 = vadd.f32 %v476, %v470
    %v478 = vadd.f32 %v477, %v471
    %v479 = vadd.f32 %v478, %v472
    %v480 = vrot.slane %v479, 4
    %v481 = vadd.f32 %v479, %v480
    %v482 = vrot.slane %v481, 2
    %v483 = vadd.f32 %v481, %v482
    %v484 = vrot.slane %v483, 1
    %v485 = vadd.f32 %v483, %v484
    %s486 = sld [smem:[#allocation2]]
    %v487 = vstv %s486
    %v488 = vadd.f32 %v485, %v487
    %489 = vst [vmem:[#allocation3] sm:$0x1] %v488
    // Predicated region
    $region30: #{tpu_custom_call.1} parent=1 // pred_check
      _
    $region31: #{tpu_custom_call.1} parent=1 // pred_check_branch
      %491 = sbr.rel (0) target = $region33
    $region32: #{tpu_custom_call.1} parent=1 // pred_region
      %s493 = ssub.s32 16, 16
      %494 = vsyncadd [#allocation4], %s493
      %s496 = sshll.u32 [#allocation3], 4
      %s497 = int_to_ptr.vmem [resolvable:$true] %s496
      %499 = dma.vmem_to_hbm [thread:$0]  %s497, 16, %s7, [#allocation4]
    $region33: #{tpu_custom_call.1} parent=1 // pred_fallthru
      _
    // Predicated region
    $region34: #{tpu_custom_call.1} parent=1 // pred_check
      _
    $region35: #{tpu_custom_call.1} parent=1 // pred_check_branch
      %501 = sbr.rel (0) target = $region37
    $region36: #{tpu_custom_call.1} parent=1 // pred_region
      %502 = dma.done [#allocation4], 16
    $region37: #{tpu_custom_call.1} parent=1 // pred_fallthru
      _
    %503 = vsyncpa [#allocation4], 1

</llo_original>
